<compile_context>
chip_gen: v7x
topology: tpu7x:2x2x1
jax: 0.10.0
libtpu: 0.0.40
codegen_flags: <defaults>
</compile_context>

<pallas_src>
import functools

import jax
import jax.numpy as jnp
from jax.experimental import pallas as pl
from jax.experimental.pallas import tpu as pltpu

LANE = 128
SUBLANE = 8


def _round_up(x, m):
    return (x + m - 1) // m * m


def _device_kind():
    try:
        return jax.devices()[0].device_kind.lower()
    except Exception:
        return ""


def _num_tensorcores():
    # v7x has 2 TensorCores per chip; v5e/v6e have 1.
    kind = _device_kind()
    return 2 if ("v7" in kind or "7x" in kind) else 1


def default_compute_dtype():
    """Recommended MXU-operand dtype: bf16 on v6e/v7x, f32 elsewhere."""
    kind = _device_kind()
    return jnp.bfloat16 if ("v6" in kind or "v7" in kind) else jnp.float32


# ----------------------------------------------------------------------------
# Kernel
# ----------------------------------------------------------------------------
def actor_kernel(x_ref, w1_ref, b1_ref, w2_ref, b2_ref, w3_ref, b3_ref, o_ref):
    # Hoisted bias loads (one broadcast per layer).
    b1 = b1_ref[...]
    b2 = b2_ref[...]
    b3 = b3_ref[...]

    x = x_ref[...]
    # Layer 1: Linear + ReLU  (MXU matmul, f32 accumulation; bias/ReLU in f32).
    h1 = jnp.dot(x, w1_ref[...], preferred_element_type=jnp.float32)
    h1 = jnp.maximum(h1 + b1, 0.0)
    # Layer 2: Linear + ReLU  (cast activations to the weight dtype for the MXU).
    h2 = jnp.dot(h1.astype(w2_ref.dtype), w2_ref[...],
                 preferred_element_type=jnp.float32)
    h2 = jnp.maximum(h2 + b2, 0.0)
    # Layer 3: Linear + Tanh.  The matmul runs at the (pre-)padded 128-lane
    # width; only the real action_dim lanes are stored back (masked vst),
    # avoiding a 32x-padded HBM writeback.
    h3 = jnp.dot(h2.astype(w3_ref.dtype), w3_ref[...],
                 preferred_element_type=jnp.float32)
    act = jnp.tanh(h3 + b3)
    o_ref[...] = act[:, : o_ref.shape[1]].astype(o_ref.dtype)


# ----------------------------------------------------------------------------
# One-time parameter preparation (hoisted out of the per-call path)
# ----------------------------------------------------------------------------
def prepare_actor_params(params, compute_dtype=jnp.float32):
    """Call once when the weights change (NOT per forward).

    - Casts weights to the MXU compute dtype (use jnp.bfloat16 on v6e/v7x).
    - Zero-pads the last layer's weight/bias to 128 output lanes so the final
      MXU matmul is lane-aligned; the kernel stores only action_dim lanes.
    - Biases stay f32 (bias/ReLU/tanh math is f32 in-kernel).

    Returns (weights_tuple, action_dim).
    """
    w1, b1, w2, b2, w3, b3 = params
    action_dim = int(w3.shape[1])
    padded = _round_up(action_dim, LANE)
    if padded != action_dim:
        w3 = jnp.zeros((w3.shape[0], padded), w3.dtype).at[:, :action_dim].set(w3)
        b3 = jnp.zeros((1, padded), b3.dtype).at[:, :action_dim].set(b3)
    weights = (
        w1.astype(compute_dtype), b1.astype(jnp.float32),
        w2.astype(compute_dtype), b2.astype(jnp.float32),
        w3.astype(compute_dtype), b3.astype(jnp.float32),
    )
    return weights, action_dim


# ----------------------------------------------------------------------------
# Forward
# ----------------------------------------------------------------------------
@functools.partial(jax.jit, static_argnames=("action_dim", "block_batch"))
def actor_forward(x, weights, *, action_dim, block_batch=4096):
    """Fused 3-layer MLP forward, streamed over the batch.

    `weights` must come from prepare_actor_params().  block_batch: max rows of
    x per grid step (rounded to a multiple of 8; clamped to the batch so small
    batches run in a single step).
    """
    w1, b1, w2, b2, w3, b3 = weights

    squeeze = x.ndim == 1
    if squeeze:
        x = x[None, :]
    batch, state_dim = x.shape

    # Stream x in the MXU compute dtype (bf16 halves the input DMA if the
    # caller already holds bf16 states; no-op in the f32 path).
    x = x.astype(w1.dtype)

    # Batch tile: multiple of 8 sublanes, no larger than the (rounded) batch.
    batch8 = _round_up(batch, SUBLANE)
    tb = min(_round_up(max(int(block_batch), 1), SUBLANE), batch8)
    # v7x: keep >= 2 grid steps for large batches so both TensorCores get work.
    ncores = _num_tensorcores()
    if ncores > 1 and batch8 > SUBLANE:
        tb = min(tb, _round_up(pl.cdiv(batch8, ncores), SUBLANE))

    padded_batch = _round_up(batch, tb)
    if padded_batch != batch:
        # Fused into this jit; only hit when batch isn't a multiple of tb.
        x = jnp.pad(x, ((0, padded_batch - batch), (0, 0)))
    grid = (padded_batch // tb,)

    const2d = lambda i: (0, 0)
    out = pl.pallas_call(
        actor_kernel,
        out_shape=jax.ShapeDtypeStruct((padded_batch, action_dim), jnp.float32),
        grid=grid,
        in_specs=[
            pl.BlockSpec((tb, state_dim), lambda i: (i, 0)),  # x: streamed
            pl.BlockSpec(w1.shape, const2d),                  # weights/biases:
            pl.BlockSpec(b1.shape, const2d),                  # VMEM-resident
            pl.BlockSpec(w2.shape, const2d),                  # across all grid
            pl.BlockSpec(b2.shape, const2d),                  # steps (constant
            pl.BlockSpec(w3.shape, const2d),                  # index_map)
            pl.BlockSpec(b3.shape, const2d),
        ],
        out_specs=pl.BlockSpec((tb, action_dim), lambda i: (i, 0)),
        compiler_params=pltpu.CompilerParams(
            dimension_semantics=("parallel",)),               # dual-TC on v7x
    )(x, w1, b1, w2, b2, w3, b3)

    if padded_batch != batch:
        out = out[:batch]
    return out[0] if squeeze else out


# ----------------------------------------------------------------------------
# Init / reference
# ----------------------------------------------------------------------------
def init_actor_params(key, state_dim, action_dim, hidden_size_1, hidden_size_2):
    """Mirrors nn.Linear default init: U(-1/sqrt(fan_in), +1/sqrt(fan_in)).
    Weights stored transposed relative to PyTorch: (in_features, out_features)."""
    keys = jax.random.split(key, 6)

    def linear(kw, kb, fan_in, fan_out):
        bound = 1.0 / jnp.sqrt(fan_in)
        w = jax.random.uniform(kw, (fan_in, fan_out), jnp.float32, -bound, bound)
        b = jax.random.uniform(kb, (1, fan_out), jnp.float32, -bound, bound)
        return w, b

    w1, b1 = linear(keys[0], keys[1], state_dim, hidden_size_1)
    w2, b2 = linear(keys[2], keys[3], hidden_size_1, hidden_size_2)
    w3, b3 = linear(keys[4], keys[5], hidden_size_2, action_dim)
    return (w1, b1, w2, b2, w3, b3)


def _reference(x, params):
    w1, b1, w2, b2, w3, b3 = params
    h1 = jnp.maximum(x @ w1 + b1, 0.0)
    h2 = jnp.maximum(h1 @ w2 + b2, 0.0)
    return jnp.tanh(h2 @ w3 + b3)


if __name__ == "__main__":
    state_dim = 16
    action_dim = 4
    hidden_size_1 = 32
    hidden_size_2 = 32

    key = jax.random.PRNGKey(0)
    k_x, k_x2, k_p = jax.random.split(key, 3)
    params = init_actor_params(k_p, state_dim, action_dim, hidden_size_1, hidden_size_2)

    # One-time prep (f32 compute; use jnp.bfloat16 / default_compute_dtype()
    # on v6e/v7x for the bf16 MXU-operand path).
    weights_f32, adim = prepare_actor_params(params, jnp.float32)

    # --- tiny batch (typical per-env-step inference): single grid step ---
    batch = 8
    x = jax.random.normal(k_x, (batch, state_dim), jnp.float32)
    out = jax.block_until_ready(actor_forward(x, weights_f32, action_dim=adim))
    ref = _reference(x, params)
    assert out.shape == (batch, action_dim)
    assert jnp.allclose(out, ref, atol=1e-5, rtol=1e-5)

    # --- 1-D state (get_action path) ---
    out_1d = jax.block_until_ready(
        actor_forward(x[0], weights_f32, action_dim=adim))
    assert out_1d.shape == (action_dim,)
    assert jnp.allclose(out_1d, ref[0], atol=1e-5, rtol=1e-5)

    # --- larger batch: default tile (single step on v5e/v6e, 2 steps on v7x) ---
    big_batch = 1000
    xb = jax.random.normal(k_x2, (big_batch, state_dim), jnp.float32)
    out_big = jax.block_until_ready(
        actor_forward(xb, weights_f32, action_dim=adim))
    ref_big = _reference(xb, params)
    assert out_big.shape == (big_batch, action_dim)
    assert jnp.allclose(out_big, ref_big, atol=1e-5, rtol=1e-5)

    # --- same batch with a small tile: exercises multi-step grid + batch pad ---
    out_tiled = jax.block_until_ready(
        actor_forward(xb, weights_f32, action_dim=adim, block_batch=256))
    assert out_tiled.shape == (big_batch, action_dim)
    assert jnp.allclose(out_tiled, ref_big, atol=1e-5, rtol=1e-5)

    # --- bf16 MXU-operand path (recommended default on v6e/v7x) ---
    weights_bf16, adim_bf16 = prepare_actor_params(params, jnp.bfloat16)
    out_bf16 = jax.block_until_ready(
        actor_forward(xb, weights_bf16, action_dim=adim_bf16))
    assert out_bf16.shape == (big_batch, action_dim)
    assert jnp.allclose(out_bf16, ref_big, atol=3e-2, rtol=3e-2)

    # TODO(synk): get_action()'s torch.tensor/.numpy() host conversion is
    # host-side glue outside kernel scope; the forward math above is the full module.
    print("KERNEL_OK")
</pallas_src>

<mosaic_0001>
module attributes {stable_mosaic.version = 11 : i64} {
  func.func @actor_kernel(%arg0: i32, %arg1: memref<8x16xf32, #tpu.memory_space<vmem>>, %arg2: memref<16x32xf32, #tpu.memory_space<vmem>>, %arg3: memref<1x32xf32, #tpu.memory_space<vmem>>, %arg4: memref<32x32xf32, #tpu.memory_space<vmem>>, %arg5: memref<1x32xf32, #tpu.memory_space<vmem>>, %arg6: memref<32x128xf32, #tpu.memory_space<vmem>>, %arg7: memref<1x128xf32, #tpu.memory_space<vmem>>, %arg8: memref<8x4xf32, #tpu.memory_space<vmem>>) attributes {dimension_semantics = [#tpu.dimension_semantics<parallel>], iteration_bounds = array<i64: 1>, scalar_prefetch = 0 : i64, scratch_operands = 0 : i64, tpu.core_type = #tpu.core_type<tc>, window_params = [{transform_indices = @transform_0, window_bounds = array<i64: 8, 16>}, {pipeline_mode = #tpu.pipeline_mode<synchronous>, transform_indices = @transform_1, window_bounds = array<i64: 16, 32>}, {pipeline_mode = #tpu.pipeline_mode<synchronous>, transform_indices = @transform_2, window_bounds = array<i64: 1, 32>}, {pipeline_mode = #tpu.pipeline_mode<synchronous>, transform_indices = @transform_3, window_bounds = array<i64: 32, 32>}, {pipeline_mode = #tpu.pipeline_mode<synchronous>, transform_indices = @transform_4, window_bounds = array<i64: 1, 32>}, {pipeline_mode = #tpu.pipeline_mode<synchronous>, transform_indices = @transform_5, window_bounds = array<i64: 32, 128>}, {pipeline_mode = #tpu.pipeline_mode<synchronous>, transform_indices = @transform_6, window_bounds = array<i64: 1, 128>}, {transform_indices = @transform_7, window_bounds = array<i64: 8, 4>}]} {
    %c0 = arith.constant 0 : index
    %c0_0 = arith.constant 0 : index
    %0 = vector.load %arg3[%c0, %c0_0] : memref<1x32xf32, #tpu.memory_space<vmem>>, vector<1x32xf32>
    %c0_1 = arith.constant 0 : index
    %c0_2 = arith.constant 0 : index
    %1 = vector.load %arg5[%c0_1, %c0_2] : memref<1x32xf32, #tpu.memory_space<vmem>>, vector<1x32xf32>
    %c0_3 = arith.constant 0 : index
    %c0_4 = arith.constant 0 : index
    %2 = vector.load %arg7[%c0_3, %c0_4] : memref<1x128xf32, #tpu.memory_space<vmem>>, vector<1x128xf32>
    %c0_5 = arith.constant 0 : index
    %c0_6 = arith.constant 0 : index
    %3 = vector.load %arg1[%c0_5, %c0_6] : memref<8x16xf32, #tpu.memory_space<vmem>>, vector<8x16xf32>
    %c0_7 = arith.constant 0 : index
    %c0_8 = arith.constant 0 : index
    %4 = vector.load %arg2[%c0_7, %c0_8] : memref<16x32xf32, #tpu.memory_space<vmem>>, vector<16x32xf32>
    %cst = arith.constant dense<0.000000e+00> : vector<8x32xf32>
    %5 = tpu.matmul %3, %4, %cst {dimension_numbers = #tpu.dot_dimension_numbers<[1], [0], [0], [1], [0, 0, 1, 1], [], []>} : vector<8x16xf32>, vector<16x32xf32>, vector<8x32xf32> -> vector<8x32xf32>
    %6 = vector.broadcast %0 : vector<1x32xf32> to vector<8x32xf32>
    %7 = arith.addf %5, %6 : vector<8x32xf32>
    %cst_9 = arith.constant 0.000000e+00 : f32
    %8 = vector.broadcast %cst_9 : f32 to vector<8x32xf32>
    %9 = arith.maximumf %7, %8 : vector<8x32xf32>
    %c0_10 = arith.constant 0 : index
    %c0_11 = arith.constant 0 : index
    %10 = vector.load %arg4[%c0_10, %c0_11] : memref<32x32xf32, #tpu.memory_space<vmem>>, vector<32x32xf32>
    %cst_12 = arith.constant dense<0.000000e+00> : vector<8x32xf32>
    %11 = tpu.matmul %9, %10, %cst_12 {dimension_numbers = #tpu.dot_dimension_numbers<[1], [0], [0], [1], [0, 0, 1, 1], [], []>} : vector<8x32xf32>, vector<32x32xf32>, vector<8x32xf32> -> vector<8x32xf32>
    %12 = vector.broadcast %1 : vector<1x32xf32> to vector<8x32xf32>
    %13 = arith.addf %11, %12 : vector<8x32xf32>
    %cst_13 = arith.constant 0.000000e+00 : f32
    %14 = vector.broadcast %cst_13 : f32 to vector<8x32xf32>
    %15 = arith.maximumf %13, %14 : vector<8x32xf32>
    %c0_14 = arith.constant 0 : index
    %c0_15 = arith.constant 0 : index
    %16 = vector.load %arg6[%c0_14, %c0_15] : memref<32x128xf32, #tpu.memory_space<vmem>>, vector<32x128xf32>
    %cst_16 = arith.constant dense<0.000000e+00> : vector<8x128xf32>
    %17 = tpu.matmul %15, %16, %cst_16 {dimension_numbers = #tpu.dot_dimension_numbers<[1], [0], [0], [1], [0, 0, 1, 1], [], []>} : vector<8x32xf32>, vector<32x128xf32>, vector<8x128xf32> -> vector<8x128xf32>
    %18 = vector.broadcast %2 : vector<1x128xf32> to vector<8x128xf32>
    %19 = arith.addf %17, %18 : vector<8x128xf32>
    %20 = math.tanh %19 : vector<8x128xf32>
    %21 = vector.extract_strided_slice %20 {offsets = [0, 0], sizes = [8, 4], strides = [1, 1]} : vector<8x128xf32> to vector<8x4xf32>
    %c0_17 = arith.constant 0 : index
    %c0_18 = arith.constant 0 : index
    %22 = vector.load %arg8[%c0_17, %c0_18] : memref<8x4xf32, #tpu.memory_space<vmem>>, vector<8x4xf32>
    tpu.vector_store %arg8[%c0_17, %c0_18], %21 {strides = array<i32>} : memref<8x4xf32, #tpu.memory_space<vmem>>, vector<8x4xf32>,
    return
  }
  func.func @transform_0(%arg0: i32) -> (i32, i32) {
    %c0_i32 = arith.constant 0 : i32
    %c0_i32_0 = arith.constant 0 : i32
    return %arg0, %c0_i32 : i32, i32
  }
  func.func @transform_1(%arg0: i32) -> (i32, i32) {
    %c0_i32 = arith.constant 0 : i32
    %c0_i32_0 = arith.constant 0 : i32
    %c0_i32_1 = arith.constant 0 : i32
    return %c0_i32, %c0_i32_0 : i32, i32
  }
  func.func @transform_2(%arg0: i32) -> (i32, i32) {
    %c0_i32 = arith.constant 0 : i32
    %c0_i32_0 = arith.constant 0 : i32
    %c0_i32_1 = arith.constant 0 : i32
    return %c0_i32, %c0_i32_0 : i32, i32
  }
  func.func @transform_3(%arg0: i32) -> (i32, i32) {
    %c0_i32 = arith.constant 0 : i32
    %c0_i32_0 = arith.constant 0 : i32
    %c0_i32_1 = arith.constant 0 : i32
    return %c0_i32, %c0_i32_0 : i32, i32
  }
  func.func @transform_4(%arg0: i32) -> (i32, i32) {
    %c0_i32 = arith.constant 0 : i32
    %c0_i32_0 = arith.constant 0 : i32
    %c0_i32_1 = arith.constant 0 : i32
    return %c0_i32, %c0_i32_0 : i32, i32
  }
  func.func @transform_5(%arg0: i32) -> (i32, i32) {
    %c0_i32 = arith.constant 0 : i32
    %c0_i32_0 = arith.constant 0 : i32
    %c0_i32_1 = arith.constant 0 : i32
    return %c0_i32, %c0_i32_0 : i32, i32
  }
  func.func @transform_6(%arg0: i32) -> (i32, i32) {
    %c0_i32 = arith.constant 0 : i32
    %c0_i32_0 = arith.constant 0 : i32
    %c0_i32_1 = arith.constant 0 : i32
    return %c0_i32, %c0_i32_0 : i32, i32
  }
  func.func @transform_7(%arg0: i32) -> (i32, i32) {
    %c0_i32 = arith.constant 0 : i32
    %c0_i32_0 = arith.constant 0 : i32
    return %arg0, %c0_i32 : i32, i32
  }
}

</mosaic_0001>

<llo_original>
// kernel: actor_forward.1
$region0: #{actor_forward.1}
  #allocation0 [shape = 'u32[]', space=smem, size = 0x4, offset = 0x4, fixed_abs, tag = 'smem constant byte address 0x4 - core index']
  #allocation1 [shape = 'u32[144,128]{1,0:T(1,128)}', space=vmem, size = 0x12000, scoped, tag = 'internal scratch']
  %s0 = inlined_call_operand.hbm [shape: f32[8,16], index: 0, kind: input, shape index: {}]
  %s1 = inlined_call_operand.hbm [shape: f32[16,32], index: 1, kind: input, shape index: {}]
  %s2 = inlined_call_operand.vmem [shape: f32[1,32], index: 2, kind: input, shape index: {}]
  %s3 = inlined_call_operand.hbm [shape: f32[32,32], index: 3, kind: input, shape index: {}]
  %s4 = inlined_call_operand.vmem [shape: f32[1,32], index: 4, kind: input, shape index: {}]
  %s5 = inlined_call_operand.hbm [shape: f32[32,128], index: 5, kind: input, shape index: {}]
  %s6 = inlined_call_operand.vmem [shape: f32[1,128], index: 6, kind: input, shape index: {}]
  %s7 = inlined_call_operand.vmem [shape: f32[8,4], index: 7, kind: output, shape index: {}]
  %s8 = sld [smem:[#allocation0]]
  $region54: #{actor_forward.1} parent=0
    _
  %s10 = ssub.s32 1, %s8
  %s11 = scalar_select 0, %s10, %s8
  $region1: #{actor_forward.1} parent=0
    #allocation2 [shape = 'u8[4096]{0}', space=vmem, size = 0x1000, scoped, tag = 'input window, operand 0, single buffered']
    #allocation3 [shape = 's32[1]{0}', space=sflag, size = 0x4, scoped, tag = 'scoped memory for actor_forward.1']
    #allocation4 [shape = 'u8[8192]{0}', space=vmem, size = 0x2000, scoped, tag = 'input window, operand 1, single buffered']
    #allocation5 [shape = 's32[1]{0}', space=sflag, size = 0x4, scoped, tag = 'scoped memory for actor_forward.1']
    #allocation6 [shape = 'u8[16384]{0}', space=vmem, size = 0x4000, scoped, tag = 'input window, operand 3, single buffered']
    #allocation7 [shape = 'u8[16384]{0}', space=vmem, size = 0x4000, scoped, tag = 'input window, operand 5, single buffered']
    #allocation8 [shape = 's32[1]{0}', space=sflag, size = 0x4, scoped, tag = 'scoped memory for actor_forward.1']
    %12 = vsyncpa [#allocation3], 0
    %13 = vsyncpa [#allocation5], 0
    %14 = vsyncpa [#allocation8], 0
    // Predicated region
    $region2: #{actor_forward.1} parent=1 // pred_check
      _
    $region3: #{actor_forward.1} parent=1 // pred_check_branch
      %16 = sbr.rel (0) target = $region5
    $region4: #{actor_forward.1} parent=1 // pred_region
      %s18 = ssub.s32 128, 128
      %19 = vsyncadd [#allocation3], %s18
      %s21 = sshll.u32 [#allocation2], 4
      %s22 = int_to_ptr.vmem [resolvable:$true] %s21
      %24 = dma.hbm_to_vmem [thread:$0]  %s0, 128, %s22, [#allocation3]
    $region5: #{actor_forward.1} parent=1 // pred_fallthru
      _
    // Predicated region
    $region6: #{actor_forward.1} parent=1 // pred_check
      _
    $region7: #{actor_forward.1} parent=1 // pred_check_branch
      %26 = sbr.rel (0) target = $region9
    $region8: #{actor_forward.1} parent=1 // pred_region
      %s28 = ssub.s32 256, 256
      %29 = vsyncadd [#allocation5], %s28
      %s30 = sshll.u32 [#allocation4], 4
      %s31 = int_to_ptr.vmem [resolvable:$true] %s30
      %36 = dma.hbm_to_vmem [thread:$0]  %s1, 256, %s31, [#allocation5], 128, 128, 8
    $region9: #{actor_forward.1} parent=1 // pred_fallthru
      _
    // Predicated region
    $region10: #{actor_forward.1} parent=1 // pred_check
      _
    $region11: #{actor_forward.1} parent=1 // pred_check_branch
      %38 = sbr.rel (0) target = $region13
    $region12: #{actor_forward.1} parent=1 // pred_region
      _
    $region13: #{actor_forward.1} parent=1 // pred_fallthru
      _
    // Predicated region
    $region14: #{actor_forward.1} parent=1 // pred_check
      _
    $region15: #{actor_forward.1} parent=1 // pred_check_branch
      %40 = sbr.rel (0) target = $region17
    $region16: #{actor_forward.1} parent=1 // pred_region
      %s42 = ssub.s32 512, 512
      %43 = vsyncadd [#allocation5], %s42
      %s44 = sshll.u32 [#allocation6], 4
      %s45 = int_to_ptr.vmem [resolvable:$true] %s44
      %50 = dma.hbm_to_vmem [thread:$0]  %s3, 512, %s45, [#allocation5], 128, 128, 8
    $region17: #{actor_forward.1} parent=1 // pred_fallthru
      _
    // Predicated region
    $region18: #{actor_forward.1} parent=1 // pred_check
      _
    $region19: #{actor_forward.1} parent=1 // pred_check_branch
      %52 = sbr.rel (0) target = $region21
    $region20: #{actor_forward.1} parent=1 // pred_region
      _
    $region21: #{actor_forward.1} parent=1 // pred_fallthru
      _
    // Predicated region
    $region22: #{actor_forward.1} parent=1 // pred_check
      _
    $region23: #{actor_forward.1} parent=1 // pred_check_branch
      %54 = sbr.rel (0) target = $region25
    $region24: #{actor_forward.1} parent=1 // pred_region
      %s56 = ssub.s32 512, 512
      %57 = vsyncadd [#allocation8], %s56
      %s58 = sshll.u32 [#allocation7], 4
      %s59 = int_to_ptr.vmem [resolvable:$true] %s58
      %64 = dma.hbm_to_vmem [thread:$0]  %s5, 512, %s59, [#allocation8], 128, 128, 8
    $region25: #{actor_forward.1} parent=1 // pred_fallthru
      _
    // Predicated region
    $region26: #{actor_forward.1} parent=1 // pred_check
      _
    $region27: #{actor_forward.1} parent=1 // pred_check_branch
      %66 = sbr.rel (0) target = $region29
    $region28: #{actor_forward.1} parent=1 // pred_region
      _
    $region29: #{actor_forward.1} parent=1 // pred_fallthru
      _
    // Predicated region
    $region30: #{actor_forward.1} parent=1 // pred_check
      _
    $region31: #{actor_forward.1} parent=1 // pred_check_branch
      %68 = sbr.rel (0) target = $region33
    $region32: #{actor_forward.1} parent=1 // pred_region
      %69 = dma.done [#allocation3], 128
    $region33: #{actor_forward.1} parent=1 // pred_fallthru
      _
    // Predicated region
    $region34: #{actor_forward.1} parent=1 // pred_check
      _
    $region35: #{actor_forward.1} parent=1 // pred_check_branch
      %71 = sbr.rel (0) target = $region37
    $region36: #{actor_forward.1} parent=1 // pred_region
      %72 = dma.done [#allocation5], 256
    $region37: #{actor_forward.1} parent=1 // pred_fallthru
      _
    // Predicated region
    $region38: #{actor_forward.1} parent=1 // pred_check
      _
    $region39: #{actor_forward.1} parent=1 // pred_check_branch
      %74 = sbr.rel (0) target = $region41
    $region40: #{actor_forward.1} parent=1 // pred_region
      %75 = dma.done [#allocation5], 512
    $region41: #{actor_forward.1} parent=1 // pred_fallthru
      _
    // Predicated region
    $region42: #{actor_forward.1} parent=1 // pred_check
      _
    $region43: #{actor_forward.1} parent=1 // pred_check_branch
      %77 = sbr.rel (0) target = $region45
    $region44: #{actor_forward.1} parent=1 // pred_region
      %78 = dma.done [#allocation8], 512
    $region45: #{actor_forward.1} parent=1 // pred_fallthru
      _
    %v79 = vld [vmem:[%s2] sm:$0x1]
    %v80 = vld [vmem:[%s4] sm:$0x1]
    %v81 = vld [vmem:[%s6] sm:$0x1]
    %v82 = vld [vmem:[#allocation2] sm:$0xff]
    %v83 = vld [vmem:[#allocation4] sm:$0xff]
    %v84 = vld [vmem:[#allocation4 + $0x8] sm:$0xff]
    %v86 = vlaneseq
    %v87 = vshrl.u32 %v86, 7
    %v88 = vsub.s32 0, %v87
    %v89 = vrot.slane %v79, %v88
    %vm91 = vcmask 130048
    %v93 = vsel %vm91, %v82, 0
    %95 = vmatprep.subr.mxu0 0.0
    %96 = vmatpush1.msra.mxu0 %v83
    %97 = vmatprep.subr.mxu0 0.0
    %98 = vmatpush1.msra.mxu0 %v84
    %99 = vmatprep.subr.mxu0 0.0
    %100 = vmatpush1.msra.mxu0 0.0
    %101 = vmatprep.subr.mxu0 0.0
    %102 = vmatpush1.msra.mxu0 0.0
    %103 = vmatprep.subr.mxu0 0.0
    %104 = vmatpush1.msra.mxu0 0.0
    %105 = vmatprep.subr.mxu0 0.0
    %106 = vmatpush1.msra.mxu0 0.0
    %107 = vmatprep.subr.mxu0 0.0
    %108 = vmatpush1.msra.mxu0 0.0
    %109 = vmatprep.subr.mxu0 0.0
    %110 = vmatpush1.msra.mxu0 0.0
    %111 = vmatprep.subr.mxu0 0.0
    %112 = vmatpush1.msra.mxu0 0.0
    %113 = vmatprep.subr.mxu0 0.0
    %114 = vmatpush1.msra.mxu0 0.0
    %115 = vmatprep.subr.mxu0 0.0
    %116 = vmatpush1.msra.mxu0 0.0
    %117 = vmatprep.subr.mxu0 0.0
    %118 = vmatpush1.msra.mxu0 0.0
    %119 = vmatprep.subr.mxu0 0.0
    %120 = vmatpush1.msra.mxu0 0.0
    %121 = vmatprep.subr.mxu0 0.0
    %122 = vmatpush1.msra.mxu0 0.0
    %123 = vmatprep.subr.mxu0 0.0
    %124 = vmatpush1.msra.mxu0 0.0
    %125 = vmatprep.subr.mxu0 0.0
    %126 = vmatpush1.msra.mxu0 0.0
    %127 = vmatprep.subr.mxu0 0.0
    %128 = vmatpush1.msra.mxu0 0.0
    %129 = vmatprep.subr.mxu0 0.0
    %130 = vmatpush1.msra.mxu0 0.0
    %131 = vmatprep.subr.mxu0 0.0
    %132 = vmatpush1.msra.mxu0 0.0
    %133 = vmatprep.subr.mxu0 0.0
    %134 = vmatpush1.msra.mxu0 0.0
    %135 = vmatprep.subr.mxu0 0.0
    %136 = vmatpush1.msra.mxu0 0.0
    %137 = vmatprep.subr.mxu0 0.0
    %138 = vmatpush1.msra.mxu0 0.0
    %139 = vmatprep.subr.mxu0 0.0
    %140 = vmatpush1.msra.mxu0 0.0
    %141 = vmatprep.subr.mxu0 0.0
    %142 = vmatpush1.msra.mxu0 0.0
    %143 = vmatprep.subr.mxu0 0.0
    %144 = vmatpush1.msra.mxu0 0.0
    %145 = vmatprep.subr.mxu0 0.0
    %146 = vmatpush1.msra.mxu0 0.0
    %147 = vmatprep.subr.mxu0 0.0
    %148 = vmatpush1.msra.mxu0 0.0
    %149 = vmatprep.subr.mxu0 0.0
    %150 = vmatpush1.msra.mxu0 0.0
    %151 = vmatprep.subr.mxu0 0.0
    %152 = vmatpush1.msra.mxu0 0.0
    %153 = vmatprep.subr.mxu0 0.0
    %154 = vmatpush1.msra.mxu0 0.0
    %155 = vmatprep.subr.mxu0 0.0
    %156 = vmatpush1.msra.mxu0 0.0
    %157 = vmatprep.subr.mxu0 0.0
    %158 = vmatpush1.msra.mxu0 0.0
    %159 = vmatprep.mubr.f32.mxu0 0.0
    %160 = vmatmul.mubr.f32.gmra.mrb[0].mxu0 %v93
    %v161 = vpop.f32.mrb[0].mxu0
    %v162 = vadd.f32 %v89, %v161
    %v163 = vpop.f32.mrb[0].mxu0
    %164 = vdwg.mxu0
    %v165 = vmax.f32 %v162, 0.0
    %v166 = vld [vmem:[#allocation6] sm:$0xff]
    %v167 = vld [vmem:[#allocation6 + $0x8] sm:$0xff]
    %v168 = vld [vmem:[#allocation6 + $0x10] sm:$0xff]
    %v169 = vld [vmem:[#allocation6 + $0x18] sm:$0xff]
    %v171 = vlaneseq
    %v172 = vshrl.u32 %v171, 7
    %v173 = vsub.s32 0, %v172
    %v174 = vrot.slane %v80, %v173
    %vm176 = vcmask 261120
    %v178 = vsel %vm176, %v165, 0
    %180 = vmatprep.subr.mxu0 0.0
    %181 = vmatpush1.msra.mxu0 %v166
    %182 = vmatprep.subr.mxu0 0.0
    %183 = vmatpush1.msra.mxu0 %v167
    %184 = vmatprep.subr.mxu0 0.0
    %185 = vmatpush1.msra.mxu0 %v168
    %186 = vmatprep.subr.mxu0 0.0
    %187 = vmatpush1.msra.mxu0 %v169
    %188 = vmatprep.subr.mxu0 0.0
    %189 = vmatpush1.msra.mxu0 0.0
    %190 = vmatprep.subr.mxu0 0.0
    %191 = vmatpush1.msra.mxu0 0.0
    %192 = vmatprep.subr.mxu0 0.0
    %193 = vmatpush1.msra.mxu0 0.0
    %194 = vmatprep.subr.mxu0 0.0
    %195 = vmatpush1.msra.mxu0 0.0
    %196 = vmatprep.subr.mxu0 0.0
    %197 = vmatpush1.msra.mxu0 0.0
    %198 = vmatprep.subr.mxu0 0.0
    %199 = vmatpush1.msra.mxu0 0.0
    %200 = vmatprep.subr.mxu0 0.0
    %201 = vmatpush1.msra.mxu0 0.0
    %202 = vmatprep.subr.mxu0 0.0
    %203 = vmatpush1.msra.mxu0 0.0
    %204 = vmatprep.subr.mxu0 0.0
    %205 = vmatpush1.msra.mxu0 0.0
    %206 = vmatprep.subr.mxu0 0.0
    %207 = vmatpush1.msra.mxu0 0.0
    %208 = vmatprep.subr.mxu0 0.0
    %209 = vmatpush1.msra.mxu0 0.0
    %210 = vmatprep.subr.mxu0 0.0
    %211 = vmatpush1.msra.mxu0 0.0
    %212 = vmatprep.subr.mxu0 0.0
    %213 = vmatpush1.msra.mxu0 0.0
    %214 = vmatprep.subr.mxu0 0.0
    %215 = vmatpush1.msra.mxu0 0.0
    %216 = vmatprep.subr.mxu0 0.0
    %217 = vmatpush1.msra.mxu0 0.0
    %218 = vmatprep.subr.mxu0 0.0
    %219 = vmatpush1.msra.mxu0 0.0
    %220 = vmatprep.subr.mxu0 0.0
    %221 = vmatpush1.msra.mxu0 0.0
    %222 = vmatprep.subr.mxu0 0.0
    %223 = vmatpush1.msra.mxu0 0.0
    %224 = vmatprep.subr.mxu0 0.0
    %225 = vmatpush1.msra.mxu0 0.0
    %226 = vmatprep.subr.mxu0 0.0
    %227 = vmatpush1.msra.mxu0 0.0
    %228 = vmatprep.subr.mxu0 0.0
    %229 = vmatpush1.msra.mxu0 0.0
    %230 = vmatprep.subr.mxu0 0.0
    %231 = vmatpush1.msra.mxu0 0.0
    %232 = vmatprep.subr.mxu0 0.0
    %233 = vmatpush1.msra.mxu0 0.0
    %234 = vmatprep.subr.mxu0 0.0
    %235 = vmatpush1.msra.mxu0 0.0
    %236 = vmatprep.subr.mxu0 0.0
    %237 = vmatpush1.msra.mxu0 0.0
    %238 = vmatprep.subr.mxu0 0.0
    %239 = vmatpush1.msra.mxu0 0.0
    %240 = vmatprep.subr.mxu0 0.0
    %241 = vmatpush1.msra.mxu0 0.0
    %242 = vmatprep.subr.mxu0 0.0
    %243 = vmatpush1.msra.mxu0 0.0
    %244 = vmatprep.mubr.f32.mxu0 0.0
    %245 = vmatmul.mubr.f32.gmra.mrb[0].mxu0 %v178
    %v246 = vpop.f32.mrb[0].mxu0
    %v247 = vadd.f32 %v174, %v246
    %v248 = vpop.f32.mrb[0].mxu0
    %249 = vdwg.mxu0
    %v250 = vmax.f32 %v247, 0.0
    %v251 = vld [vmem:[#allocation7] sm:$0xff]
    %v252 = vld [vmem:[#allocation7 + $0x8] sm:$0xff]
    %v253 = vld [vmem:[#allocation7 + $0x10] sm:$0xff]
    %v254 = vld [vmem:[#allocation7 + $0x18] sm:$0xff]
    %v256 = vlaneseq
    %v257 = vshrl.u32 %v256, 7
    %v258 = vsub.s32 0, %v257
    %v259 = vrot.slane %v81, %v258
    %v262 = vsel %vm176, %v250, 0
    %264 = vmatprep.subr.mxu0 0.0
    %265 = vmatpush1.msra.mxu0 %v251
    %266 = vmatprep.subr.mxu0 0.0
    %267 = vmatpush1.msra.mxu0 %v252
    %268 = vmatprep.subr.mxu0 0.0
    %269 = vmatpush1.msra.mxu0 %v253
    %270 = vmatprep.subr.mxu0 0.0
    %271 = vmatpush1.msra.mxu0 %v254
    %272 = vmatprep.subr.mxu0 0.0
    %273 = vmatpush1.msra.mxu0 0.0
    %274 = vmatprep.subr.mxu0 0.0
    %275 = vmatpush1.msra.mxu0 0.0
    %276 = vmatprep.subr.mxu0 0.0
    %277 = vmatpush1.msra.mxu0 0.0
    %278 = vmatprep.subr.mxu0 0.0
    %279 = vmatpush1.msra.mxu0 0.0
    %280 = vmatprep.subr.mxu0 0.0
    %281 = vmatpush1.msra.mxu0 0.0
    %282 = vmatprep.subr.mxu0 0.0
    %283 = vmatpush1.msra.mxu0 0.0
    %284 = vmatprep.subr.mxu0 0.0
    %285 = vmatpush1.msra.mxu0 0.0
    %286 = vmatprep.subr.mxu0 0.0
    %287 = vmatpush1.msra.mxu0 0.0
    %288 = vmatprep.subr.mxu0 0.0
    %289 = vmatpush1.msra.mxu0 0.0
    %290 = vmatprep.subr.mxu0 0.0
    %291 = vmatpush1.msra.mxu0 0.0
    %292 = vmatprep.subr.mxu0 0.0
    %293 = vmatpush1.msra.mxu0 0.0
    %294 = vmatprep.subr.mxu0 0.0
    %295 = vmatpush1.msra.mxu0 0.0
    %296 = vmatprep.subr.mxu0 0.0
    %297 = vmatpush1.msra.mxu0 0.0
    %298 = vmatprep.subr.mxu0 0.0
    %299 = vmatpush1.msra.mxu0 0.0
    %300 = vmatprep.subr.mxu0 0.0
    %301 = vmatpush1.msra.mxu0 0.0
    %302 = vmatprep.subr.mxu0 0.0
    %303 = vmatpush1.msra.mxu0 0.0
    %304 = vmatprep.subr.mxu0 0.0
    %305 = vmatpush1.msra.mxu0 0.0
    %306 = vmatprep.subr.mxu0 0.0
    %307 = vmatpush1.msra.mxu0 0.0
    %308 = vmatprep.subr.mxu0 0.0
    %309 = vmatpush1.msra.mxu0 0.0
    %310 = vmatprep.subr.mxu0 0.0
    %311 = vmatpush1.msra.mxu0 0.0
    %312 = vmatprep.subr.mxu0 0.0
    %313 = vmatpush1.msra.mxu0 0.0
    %314 = vmatprep.subr.mxu0 0.0
    %315 = vmatpush1.msra.mxu0 0.0
    %316 = vmatprep.subr.mxu0 0.0
    %317 = vmatpush1.msra.mxu0 0.0
    %318 = vmatprep.subr.mxu0 0.0
    %319 = vmatpush1.msra.mxu0 0.0
    %320 = vmatprep.subr.mxu0 0.0
    %321 = vmatpush1.msra.mxu0 0.0
    %322 = vmatprep.subr.mxu0 0.0
    %323 = vmatpush1.msra.mxu0 0.0
    %324 = vmatprep.subr.mxu0 0.0
    %325 = vmatpush1.msra.mxu0 0.0
    %326 = vmatprep.subr.mxu0 0.0
    %327 = vmatpush1.msra.mxu0 0.0
    %328 = vmatprep.mubr.f32.mxu0 0.0
    %329 = vmatmul.mubr.f32.gmra.mrb[0].mxu0 %v262
    %v330 = vpop.f32.mrb[0].mxu0
    %v331 = vadd.f32 %v259, %v330
    %v332 = vpop.f32.mrb[0].mxu0
    %333 = vdwg.mxu0
    %v334 = vtanh.pop %v331
    %vm335 = vcmask 31744
    %336 = vst.msk [vmem:[%s7] sm:$0xff] %vm335, %v334
    // Predicated region
    $region46: #{actor_forward.1} parent=1 // pred_check
      _
    $region47: #{actor_forward.1} parent=1 // pred_check_branch
      %338 = sbr.rel (0) target = $region49
    $region48: #{actor_forward.1} parent=1 // pred_region
      _
    $region49: #{actor_forward.1} parent=1 // pred_fallthru
      _
    // Predicated region
    $region50: #{actor_forward.1} parent=1 // pred_check
      _
    $region51: #{actor_forward.1} parent=1 // pred_check_branch
      %340 = sbr.rel (0) target = $region53
    $region52: #{actor_forward.1} parent=1 // pred_region
      _
    $region53: #{actor_forward.1} parent=1 // pred_fallthru
      _
    %341 = vsyncpa [#allocation3], 1
    %342 = vsyncpa [#allocation5], 1
    %343 = vsyncpa [#allocation8], 1

</llo_original>
